<compile_context>
chip_gen: v7x
topology: tpu7x:2x2x1
jax: 0.10.0
libtpu: 0.0.40
codegen_flags: <defaults>
</compile_context>

<pallas_src>
import jax
import jax.numpy as jnp
from jax.experimental import pallas as pl
from jax.experimental.pallas import tpu as pltpu

LANE = 128
SUBLANE = 8


def _critic_kernel(x_ref, w1_ref, b1_ref, w2_ref, b2_ref, out_ref):
    # Two MXU matmuls (bf16 operands, f32 accumulate) fused with bias-add +
    # ReLU, everything resident in VMEM.  x arrives as f32 and is cast here
    # (VPU cast is free under the DMA).
    a_out = out_ref.shape[-1]                                  # real action dim
    x = x_ref[...].astype(w1_ref.dtype)                        # f32 -> bf16
    h = jnp.dot(x, w1_ref[...],
                preferred_element_type=jnp.float32)            # (TB, H) f32
    h = jnp.maximum(h + b1_ref[...], 0.0)                      # bias + ReLU in f32
    h = h.astype(w2_ref.dtype)                                 # back to bf16 for MXU
    v = jnp.dot(h, w2_ref[...],
                preferred_element_type=jnp.float32)            # (TB, A_pad) f32
    v = v + b2_ref[...]
    # Narrow store: only the real action columns hit HBM (padded lanes stay
    # on-chip; masked vst is far cheaper than the padded DMA it replaces).
    out_ref[...] = v[:, :a_out].astype(out_ref.dtype)


def prepare_params(w1, b1, w2, b2, compute_dtype=jnp.bfloat16):
    """Convert f32 (in,out)-layout Linear params to the kernel layout:
    bf16 matmul weights, f32 biases, value head zero-padded to 128 lanes."""
    S, H = w1.shape
    H2, A = w2.shape
    assert H2 == H
    a_pad = ((A + LANE - 1) // LANE) * LANE
    w2p = jnp.zeros((H, a_pad), jnp.float32).at[:, :A].set(w2)
    b2p = jnp.zeros((1, a_pad), jnp.float32).at[:, :A].set(b2.reshape(1, -1))
    return dict(
        w1=w1.astype(compute_dtype),
        b1=b1.reshape(1, H).astype(jnp.float32),
        w2=w2p.astype(compute_dtype),
        b2=b2p,
        action_space=A,
    )


def critic_sac_forward(x, params, *, batch_tile=4096):
    """x: (batch, ...) -> value: (batch, action_space)."""
    w1, b1, w2, b2 = params["w1"], params["b1"], params["w2"], params["b2"]
    A = params["action_space"]
    S, H = w1.shape
    a_pad = w2.shape[1]
    compute_dtype = w1.dtype

    batch = x.shape[0]
    # Only flatten; keep f32 (cast happens inside the kernel).
    x2d = x if x.ndim == 2 else x.reshape(batch, -1)
    assert x2d.shape[1] == S

    w_isz = jnp.dtype(compute_dtype).itemsize
    x_isz = jnp.dtype(x2d.dtype).itemsize
    cost = pl.CostEstimate(
        flops=2 * batch * (S * H + H * a_pad),
        transcendentals=0,
        bytes_accessed=(batch * S * x_isz            # x read (f32)
                        + S * H * w_isz              # w1 (bf16)
                        + H * a_pad * w_isz          # w2 (bf16)
                        + (H + a_pad) * 4            # biases (f32)
                        + batch * A * 4),            # output (f32, unpadded)
    )
    out_shape = jax.ShapeDtypeStruct((batch, A), jnp.float32)

    if batch <= batch_tile:
        # Tiny problem: single full-array VMEM blocks, no grid, no pipeline.
        vmem = pl.BlockSpec(memory_space=pltpu.MemorySpace.VMEM)
        return pl.pallas_call(
            _critic_kernel,
            out_shape=out_shape,
            in_specs=[vmem, vmem, vmem, vmem, vmem],
            out_specs=vmem,
            cost_estimate=cost,
        )(x2d, w1, b1, w2, b2)

    # Large batch: stream x / out over the batch axis with big tiles while the
    # tiny weights stay VMEM-resident across every grid step.
    assert batch_tile % SUBLANE == 0
    # Guardrail for very large tiles on v5e's smaller default scoped VMEM.
    per_step_bytes = 2 * batch_tile * (S * x_isz + A * 4)  # double-buffered x/out
    compiler_params = pltpu.CompilerParams(
        dimension_semantics=("parallel",),
        vmem_limit_bytes=(64 << 20) if per_step_bytes > (12 << 20) else None,
    )
    return pl.pallas_call(
        _critic_kernel,
        out_shape=out_shape,
        grid=(pl.cdiv(batch, batch_tile),),
        in_specs=[
            pl.BlockSpec((batch_tile, S), lambda i: (i, 0)),   # f32 x tile
            pl.BlockSpec((S, H), lambda i: (0, 0)),
            pl.BlockSpec((1, H), lambda i: (0, 0)),
            pl.BlockSpec((H, a_pad), lambda i: (0, 0)),
            pl.BlockSpec((1, a_pad), lambda i: (0, 0)),
        ],
        # Last block dim == full array dim (A) -> legal, unpadded output.
        out_specs=pl.BlockSpec((batch_tile, A), lambda i: (i, 0)),
        compiler_params=compiler_params,
        cost_estimate=cost,
    )(x2d, w1, b1, w2, b2)


def init_params(key, state_space, action_space, hidden_size=64):
    """Deterministic PyTorch-style (uniform +/- 1/sqrt(fan_in)) Linear init."""
    k1, k2, k3, k4 = jax.random.split(key, 4)
    lim1 = 1.0 / jnp.sqrt(jnp.float32(state_space))
    lim2 = 1.0 / jnp.sqrt(jnp.float32(hidden_size))
    w1 = jax.random.uniform(k1, (state_space, hidden_size), jnp.float32,
                            -lim1, lim1)
    b1 = jax.random.uniform(k2, (1, hidden_size), jnp.float32, -lim1, lim1)
    w2 = jax.random.uniform(k3, (hidden_size, action_space), jnp.float32,
                            -lim2, lim2)
    b2 = jax.random.uniform(k4, (1, action_space), jnp.float32, -lim2, lim2)
    return w1, b1, w2, b2


if __name__ == "__main__":
    key = jax.random.PRNGKey(0)
    batch, state_space, hidden_size, action_space = 8, 32, 64, 4

    kx, kp, kb = jax.random.split(key, 3)
    x = jax.random.normal(kx, (batch, state_space), jnp.float32)
    w1, b1, w2, b2 = init_params(kp, state_space, action_space, hidden_size)
    params = prepare_params(w1, b1, w2, b2)

    # Small-batch (no-grid) path.
    value = jax.block_until_ready(critic_sac_forward(x, params))
    assert value.shape == (batch, action_space)
    assert value.dtype == jnp.float32

    # Matched-precision reference (same bf16-operand / f32-accumulate path).
    def ref_forward(xin):
        xr = xin.reshape(xin.shape[0], -1).astype(jnp.bfloat16)
        h = jnp.dot(xr, w1.astype(jnp.bfloat16),
                    preferred_element_type=jnp.float32) + b1
        h = jnp.maximum(h, 0.0).astype(jnp.bfloat16)
        return jnp.dot(h, w2.astype(jnp.bfloat16),
                       preferred_element_type=jnp.float32) + b2

    assert jnp.allclose(value, ref_forward(x), atol=1e-4, rtol=1e-4)

    # Loose check against the pure-f32 PyTorch semantics.
    ref_f32 = jnp.maximum(x @ w1 + b1, 0.0) @ w2 + b2
    assert jnp.allclose(value, ref_f32, atol=5e-2, rtol=5e-2)

    # Exercise the batch-tiled (pipelined, megacore-parallel) path: 2 grid
    # steps at the default tile so a v7x chip can use both TensorCores.
    big_batch = 8192
    xb = jax.random.normal(kb, (big_batch, state_space), jnp.float32)
    value_big = jax.block_until_ready(critic_sac_forward(xb, params))
    assert value_big.shape == (big_batch, action_space)
    assert jnp.allclose(value_big, ref_forward(xb), atol=1e-4, rtol=1e-4)

    # Remainder-tile path (batch not a multiple of batch_tile).
    xr_in = xb[:5000]
    value_rem = jax.block_until_ready(
        critic_sac_forward(xr_in, params, batch_tile=2048))
    assert value_rem.shape == (5000, action_space)
    assert jnp.allclose(value_rem, ref_forward(xr_in), atol=1e-4, rtol=1e-4)

    print("KERNEL_OK")
</pallas_src>

<mosaic_0001>
module attributes {stable_mosaic.version = 11 : i64} {
  func.func @_critic_kernel(%arg0: memref<8x32xf32, #tpu.memory_space<vmem>>, %arg1: memref<32x64xbf16, #tpu.memory_space<vmem>>, %arg2: memref<1x64xf32, #tpu.memory_space<vmem>>, %arg3: memref<64x128xbf16, #tpu.memory_space<vmem>>, %arg4: memref<1x128xf32, #tpu.memory_space<vmem>>, %arg5: memref<8x4xf32, #tpu.memory_space<vmem>>) attributes {dimension_semantics = [], scalar_prefetch = 0 : i64, scratch_operands = 0 : i64, tpu.core_type = #tpu.core_type<tc>} {
    %c0 = arith.constant 0 : index
    %c0_0 = arith.constant 0 : index
    %0 = vector.load %arg0[%c0, %c0_0] : memref<8x32xf32, #tpu.memory_space<vmem>>, vector<8x32xf32>
    %1 = arith.truncf %0 : vector<8x32xf32> to vector<8x32xbf16>
    %c0_1 = arith.constant 0 : index
    %c0_2 = arith.constant 0 : index
    %2 = vector.load %arg1[%c0_1, %c0_2] : memref<32x64xbf16, #tpu.memory_space<vmem>>, vector<32x64xbf16>
    %cst = arith.constant dense<0.000000e+00> : vector<8x64xf32>
    %3 = tpu.matmul %1, %2, %cst {dimension_numbers = #tpu.dot_dimension_numbers<[1], [0], [0], [1], [0, 0, 1, 1], [], []>} : vector<8x32xbf16>, vector<32x64xbf16>, vector<8x64xf32> -> vector<8x64xf32>
    %c0_3 = arith.constant 0 : index
    %c0_4 = arith.constant 0 : index
    %4 = vector.load %arg2[%c0_3, %c0_4] : memref<1x64xf32, #tpu.memory_space<vmem>>, vector<1x64xf32>
    %5 = vector.broadcast %4 : vector<1x64xf32> to vector<8x64xf32>
    %6 = arith.addf %3, %5 : vector<8x64xf32>
    %cst_5 = arith.constant 0.000000e+00 : f32
    %7 = vector.broadcast %cst_5 : f32 to vector<8x64xf32>
    %8 = arith.maximumf %6, %7 : vector<8x64xf32>
    %9 = arith.truncf %8 : vector<8x64xf32> to vector<8x64xbf16>
    %c0_6 = arith.constant 0 : index
    %c0_7 = arith.constant 0 : index
    %10 = vector.load %arg3[%c0_6, %c0_7] : memref<64x128xbf16, #tpu.memory_space<vmem>>, vector<64x128xbf16>
    %cst_8 = arith.constant dense<0.000000e+00> : vector<8x128xf32>
    %11 = tpu.matmul %9, %10, %cst_8 {dimension_numbers = #tpu.dot_dimension_numbers<[1], [0], [0], [1], [0, 0, 1, 1], [], []>} : vector<8x64xbf16>, vector<64x128xbf16>, vector<8x128xf32> -> vector<8x128xf32>
    %c0_9 = arith.constant 0 : index
    %c0_10 = arith.constant 0 : index
    %12 = vector.load %arg4[%c0_9, %c0_10] : memref<1x128xf32, #tpu.memory_space<vmem>>, vector<1x128xf32>
    %13 = vector.broadcast %12 : vector<1x128xf32> to vector<8x128xf32>
    %14 = arith.addf %11, %13 : vector<8x128xf32>
    %15 = vector.extract_strided_slice %14 {offsets = [0, 0], sizes = [8, 4], strides = [1, 1]} : vector<8x128xf32> to vector<8x4xf32>
    %c0_11 = arith.constant 0 : index
    %c0_12 = arith.constant 0 : index
    %16 = vector.load %arg5[%c0_11, %c0_12] : memref<8x4xf32, #tpu.memory_space<vmem>>, vector<8x4xf32>
    tpu.vector_store %arg5[%c0_11, %c0_12], %15 {strides = array<i32>} : memref<8x4xf32, #tpu.memory_space<vmem>>, vector<8x4xf32>,
    return
  }
}

</mosaic_0001>

<llo_original>
// kernel: tpu_custom_call.1
$region0: #{tpu_custom_call.1}
  #allocation0 [shape = 'u32[]', space=smem, size = 0x4, offset = 0x4, fixed_abs, tag = 'smem constant byte address 0x4 - core index']
  #allocation1 [shape = 'u32[144,128]{1,0:T(1,128)}', space=vmem, size = 0x12000, scoped, tag = 'internal scratch']
  %s0 = inlined_call_operand.hbm [shape: f32[8,32], index: 0, kind: input, shape index: {}]
  %s1 = inlined_call_operand.hbm [shape: bf16[32,64], index: 1, kind: input, shape index: {}]
  %s2 = inlined_call_operand.vmem [shape: f32[1,64], index: 2, kind: input, shape index: {}]
  %s3 = inlined_call_operand.hbm [shape: bf16[64,128], index: 3, kind: input, shape index: {}]
  %s4 = inlined_call_operand.vmem [shape: f32[1,128], index: 4, kind: input, shape index: {}]
  %s5 = inlined_call_operand.vmem [shape: f32[8,4], index: 5, kind: output, shape index: {}]
  %s6 = sld [smem:[#allocation0]]
  $region42: #{tpu_custom_call.1} parent=0
    _
  %s8 = ssub.s32 1, %s6
  %s9 = scalar_select 0, %s8, %s6
  $region1: #{tpu_custom_call.1} parent=0
    #allocation2 [shape = 'u8[4096]{0}', space=vmem, size = 0x1000, scoped, tag = 'input window, operand 0, single buffered']
    #allocation3 [shape = 's32[1]{0}', space=sflag, size = 0x4, scoped, tag = 'scoped memory for tpu_custom_call.1']
    #allocation4 [shape = 'u8[8192]{0}', space=vmem, size = 0x2000, scoped, tag = 'input window, operand 1, single buffered']
    #allocation5 [shape = 's32[1]{0}', space=sflag, size = 0x4, scoped, tag = 'scoped memory for tpu_custom_call.1']
    #allocation6 [shape = 'u8[16384]{0}', space=vmem, size = 0x4000, scoped, tag = 'input window, operand 3, single buffered']
    %10 = vsyncpa [#allocation3], 0
    %11 = vsyncpa [#allocation5], 0
    // Predicated region
    $region2: #{tpu_custom_call.1} parent=1 // pred_check
      _
    $region3: #{tpu_custom_call.1} parent=1 // pred_check_branch
      %13 = sbr.rel (0) target = $region5
    $region4: #{tpu_custom_call.1} parent=1 // pred_region
      %s15 = ssub.s32 128, 128
      %16 = vsyncadd [#allocation3], %s15
      %s18 = sshll.u32 [#allocation2], 4
      %s19 = int_to_ptr.vmem [resolvable:$true] %s18
      %21 = dma.hbm_to_vmem [thread:$0]  %s0, 128, %s19, [#allocation3]
    $region5: #{tpu_custom_call.1} parent=1 // pred_fallthru
      _
    // Predicated region
    $region6: #{tpu_custom_call.1} parent=1 // pred_check
      _
    $region7: #{tpu_custom_call.1} parent=1 // pred_check_branch
      %23 = sbr.rel (0) target = $region9
    $region8: #{tpu_custom_call.1} parent=1 // pred_region
      %s25 = ssub.s32 256, 256
      %26 = vsyncadd [#allocation5], %s25
      %s27 = sshll.u32 [#allocation4], 4
      %s28 = int_to_ptr.vmem [resolvable:$true] %s27
      %33 = dma.hbm_to_vmem [thread:$0]  %s1, 256, %s28, [#allocation5], 64, 64, 4
    $region9: #{tpu_custom_call.1} parent=1 // pred_fallthru
      _
    // Predicated region
    $region10: #{tpu_custom_call.1} parent=1 // pred_check
      _
    $region11: #{tpu_custom_call.1} parent=1 // pred_check_branch
      %35 = sbr.rel (0) target = $region13
    $region12: #{tpu_custom_call.1} parent=1 // pred_region
      _
    $region13: #{tpu_custom_call.1} parent=1 // pred_fallthru
      _
    // Predicated region
    $region14: #{tpu_custom_call.1} parent=1 // pred_check
      _
    $region15: #{tpu_custom_call.1} parent=1 // pred_check_branch
      %37 = sbr.rel (0) target = $region17
    $region16: #{tpu_custom_call.1} parent=1 // pred_region
      %s39 = ssub.s32 512, 512
      %40 = vsyncadd [#allocation5], %s39
      %s41 = sshll.u32 [#allocation6], 4
      %s42 = int_to_ptr.vmem [resolvable:$true] %s41
      %47 = dma.hbm_to_vmem [thread:$0]  %s3, 512, %s42, [#allocation5], 64, 64, 4
    $region17: #{tpu_custom_call.1} parent=1 // pred_fallthru
      _
    // Predicated region
    $region18: #{tpu_custom_call.1} parent=1 // pred_check
      _
    $region19: #{tpu_custom_call.1} parent=1 // pred_check_branch
      %49 = sbr.rel (0) target = $region21
    $region20: #{tpu_custom_call.1} parent=1 // pred_region
      _
    $region21: #{tpu_custom_call.1} parent=1 // pred_fallthru
      _
    // Predicated region
    $region22: #{tpu_custom_call.1} parent=1 // pred_check
      _
    $region23: #{tpu_custom_call.1} parent=1 // pred_check_branch
      %51 = sbr.rel (0) target = $region25
    $region24: #{tpu_custom_call.1} parent=1 // pred_region
      %52 = dma.done [#allocation3], 128
    $region25: #{tpu_custom_call.1} parent=1 // pred_fallthru
      _
    // Predicated region
    $region26: #{tpu_custom_call.1} parent=1 // pred_check
      _
    $region27: #{tpu_custom_call.1} parent=1 // pred_check_branch
      %54 = sbr.rel (0) target = $region29
    $region28: #{tpu_custom_call.1} parent=1 // pred_region
      %55 = dma.done [#allocation5], 256
    $region29: #{tpu_custom_call.1} parent=1 // pred_fallthru
      _
    // Predicated region
    $region30: #{tpu_custom_call.1} parent=1 // pred_check
      _
    $region31: #{tpu_custom_call.1} parent=1 // pred_check_branch
      %57 = sbr.rel (0) target = $region33
    $region32: #{tpu_custom_call.1} parent=1 // pred_region
      %58 = dma.done [#allocation5], 512
    $region33: #{tpu_custom_call.1} parent=1 // pred_fallthru
      _
    %v60 = vld [vmem:[#allocation2] sm:$0xff]
    %v61 = vpack.c.bf16 %v60, %v60
    %v62 = vld [vmem:[#allocation4] sm:$0xf]
    %v63 = vld [vmem:[#allocation4 + $0x4] sm:$0xf]
    %v64 = vld [vmem:[#allocation4 + $0x8] sm:$0xf]
    %v65 = vld [vmem:[#allocation4 + $0xc] sm:$0xf]
    %v66 = vld [vmem:[%s2] sm:$0x1]
    %v68 = vlaneseq
    %v69 = vshrl.u32 %v68, 7
    %v70 = vsub.s32 0, %v69
    %v71 = vrot.slane %v66, %v70
    %v77 = vunpack.c.l.b16 %v62
    %v78 = vunpack.c.l.b16 %v63
    %v79 = vunpack.c.l.b16 %v64
    %v80 = vunpack.c.l.b16 %v65
    %v81 = vpack.c.b16 %v78, %v77
    %v82 = vpack.c.b16 %v80, %v79
    %vm85 = vcmask 261120
    %v87 = vsel %vm85, %v61, 0
    %89 = vmatprep.subr.bf16.mxu0 0
    %90 = vmatpush1.bf16.msra.mxu0 %v81
    %91 = vmatprep.subr.bf16.mxu0 0
    %92 = vmatpush1.bf16.msra.mxu0 %v82
    %93 = vmatprep.subr.bf16.mxu0 0
    %94 = vmatpush1.bf16.msra.mxu0 0
    %95 = vmatprep.subr.bf16.mxu0 0
    %96 = vmatpush1.bf16.msra.mxu0 0
    %97 = vmatprep.subr.bf16.mxu0 0
    %98 = vmatpush1.bf16.msra.mxu0 0
    %99 = vmatprep.subr.bf16.mxu0 0
    %100 = vmatpush1.bf16.msra.mxu0 0
    %101 = vmatprep.subr.bf16.mxu0 0
    %102 = vmatpush1.bf16.msra.mxu0 0
    %103 = vmatprep.subr.bf16.mxu0 0
    %104 = vmatpush1.bf16.msra.mxu0 0
    %105 = vmatprep.subr.bf16.mxu0 0
    %106 = vmatpush1.bf16.msra.mxu0 0
    %107 = vmatprep.subr.bf16.mxu0 0
    %108 = vmatpush1.bf16.msra.mxu0 0
    %109 = vmatprep.subr.bf16.mxu0 0
    %110 = vmatpush1.bf16.msra.mxu0 0
    %111 = vmatprep.subr.bf16.mxu0 0
    %112 = vmatpush1.bf16.msra.mxu0 0
    %113 = vmatprep.subr.bf16.mxu0 0
    %114 = vmatpush1.bf16.msra.mxu0 0
    %115 = vmatprep.subr.bf16.mxu0 0
    %116 = vmatpush1.bf16.msra.mxu0 0
    %117 = vmatprep.subr.bf16.mxu0 0
    %118 = vmatpush1.bf16.msra.mxu0 0
    %119 = vmatprep.subr.bf16.mxu0 0
    %120 = vmatpush1.bf16.msra.mxu0 0
    %121 = vmatprep.mubr.bf16.mxu0 0
    %122 = vmatmul.mubr.bf16.gmra.mrb[0].mxu0 %v87
    %v123 = vpop.f32.mrb[0].mxu0
    %v124 = vadd.f32 %v71, %v123
    %v125 = vpop.f32.mrb[0].mxu0
    %v126 = vpop.f32.mrb[0].mxu0
    %v127 = vpop.f32.mrb[0].mxu0
    %128 = vdwg.mxu0
    %v129 = vmax.f32 %v124, 0.0
    %v130 = vpack.c.bf16 %v129, %v129
    %v131 = vld [vmem:[#allocation6] sm:$0xf]
    %v132 = vld [vmem:[#allocation6 + $0x4] sm:$0xf]
    %v133 = vld [vmem:[#allocation6 + $0x8] sm:$0xf]
    %v134 = vld [vmem:[#allocation6 + $0xc] sm:$0xf]
    %v135 = vld [vmem:[#allocation6 + $0x10] sm:$0xf]
    %v136 = vld [vmem:[#allocation6 + $0x14] sm:$0xf]
    %v137 = vld [vmem:[#allocation6 + $0x18] sm:$0xf]
    %v138 = vld [vmem:[#allocation6 + $0x1c] sm:$0xf]
    %v139 = vld [vmem:[%s4] sm:$0x1]
    %v141 = vlaneseq
    %v142 = vshrl.u32 %v141, 7
    %v143 = vsub.s32 0, %v142
    %v144 = vrot.slane %v139, %v143
    %v154 = vunpack.c.l.b16 %v131
    %v155 = vunpack.c.l.b16 %v132
    %v156 = vunpack.c.l.b16 %v133
    %v157 = vunpack.c.l.b16 %v134
    %v158 = vunpack.c.l.b16 %v135
    %v159 = vunpack.c.l.b16 %v136
    %v160 = vunpack.c.l.b16 %v137
    %v161 = vunpack.c.l.b16 %v138
    %v162 = vpack.c.b16 %v155, %v154
    %v163 = vpack.c.b16 %v157, %v156
    %v164 = vpack.c.b16 %v159, %v158
    %v165 = vpack.c.b16 %v161, %v160
    %vm170 = vcmask 523264
    %v172 = vsel %vm170, %v130, 0
    %174 = vmatprep.subr.bf16.mxu0 0
    %175 = vmatpush1.bf16.msra.mxu0 %v162
    %176 = vmatprep.subr.bf16.mxu0 0
    %177 = vmatpush1.bf16.msra.mxu0 %v163
    %178 = vmatprep.subr.bf16.mxu0 0
    %179 = vmatpush1.bf16.msra.mxu0 %v164
    %180 = vmatprep.subr.bf16.mxu0 0
    %181 = vmatpush1.bf16.msra.mxu0 %v165
    %182 = vmatprep.subr.bf16.mxu0 0
    %183 = vmatpush1.bf16.msra.mxu0 0
    %184 = vmatprep.subr.bf16.mxu0 0
    %185 = vmatpush1.bf16.msra.mxu0 0
    %186 = vmatprep.subr.bf16.mxu0 0
    %187 = vmatpush1.bf16.msra.mxu0 0
    %188 = vmatprep.subr.bf16.mxu0 0
    %189 = vmatpush1.bf16.msra.mxu0 0
    %190 = vmatprep.subr.bf16.mxu0 0
    %191 = vmatpush1.bf16.msra.mxu0 0
    %192 = vmatprep.subr.bf16.mxu0 0
    %193 = vmatpush1.bf16.msra.mxu0 0
    %194 = vmatprep.subr.bf16.mxu0 0
    %195 = vmatpush1.bf16.msra.mxu0 0
    %196 = vmatprep.subr.bf16.mxu0 0
    %197 = vmatpush1.bf16.msra.mxu0 0
    %198 = vmatprep.subr.bf16.mxu0 0
    %199 = vmatpush1.bf16.msra.mxu0 0
    %200 = vmatprep.subr.bf16.mxu0 0
    %201 = vmatpush1.bf16.msra.mxu0 0
    %202 = vmatprep.subr.bf16.mxu0 0
    %203 = vmatpush1.bf16.msra.mxu0 0
    %204 = vmatprep.subr.bf16.mxu0 0
    %205 = vmatpush1.bf16.msra.mxu0 0
    %206 = vmatprep.mubr.bf16.mxu0 0
    %207 = vmatmul.mubr.bf16.gmra.mrb[0].mxu0 %v172
    %v208 = vpop.f32.mrb[0].mxu0
    %v209 = vadd.f32 %v144, %v208
    %v210 = vpop.f32.mrb[0].mxu0
    %v211 = vpop.f32.mrb[0].mxu0
    %v212 = vpop.f32.mrb[0].mxu0
    %213 = vdwg.mxu0
    %vm214 = vcmask 31744
    %215 = vst.msk [vmem:[%s5] sm:$0xff] %vm214, %v209
    // Predicated region
    $region34: #{tpu_custom_call.1} parent=1 // pred_check
      _
    $region35: #{tpu_custom_call.1} parent=1 // pred_check_branch
      %217 = sbr.rel (0) target = $region37
    $region36: #{tpu_custom_call.1} parent=1 // pred_region
      _
    $region37: #{tpu_custom_call.1} parent=1 // pred_fallthru
      _
    // Predicated region
    $region38: #{tpu_custom_call.1} parent=1 // pred_check
      _
    $region39: #{tpu_custom_call.1} parent=1 // pred_check_branch
      %219 = sbr.rel (0) target = $region41
    $region40: #{tpu_custom_call.1} parent=1 // pred_region
      _
    $region41: #{tpu_custom_call.1} parent=1 // pred_fallthru
      _
    %220 = vsyncpa [#allocation3], 1
    %221 = vsyncpa [#allocation5], 1

</llo_original>
